<compile_context>
chip_gen: v6e
topology: v6e:2x2x1
jax: 0.10.0
libtpu: 0.0.40
codegen_flags: <defaults>
</compile_context>

<pallas_src>
import numpy as np
import jax
import jax.numpy as jnp
from jax.experimental import pallas as pl
from jax.experimental.pallas import tpu as pltpu

MAX_LEVEL = 4          # module default max_level=4
KERNEL_SIZE = 2        # haar
SQRT2_INV = 1.0 / np.sqrt(2.0)


# ---------------------------------------------------------------------------
# Deterministic parameter / filter setup (plain numpy glue).
# ---------------------------------------------------------------------------
def build_haar_analysis_matrix(L, levels):
    """H such that c_col = H @ x_col gives the `levels`-level Haar coefficients
    in layout [approx_L, detail_L, detail_{L-1}, ..., detail_1].  Orthogonal."""
    H = np.eye(L, dtype=np.float64)
    for lev in range(levels):
        n = L >> lev
        A = np.eye(L, dtype=np.float64)
        A[:n, :n] = 0.0
        for i in range(n // 2):
            A[i, 2 * i] = SQRT2_INV           # lowpass  [1,  1]/sqrt(2)
            A[i, 2 * i + 1] = SQRT2_INV
            A[n // 2 + i, 2 * i] = SQRT2_INV  # highpass [1, -1]/sqrt(2)
            A[n // 2 + i, 2 * i + 1] = -SQRT2_INV
        H = A @ H
    return H


def build_threshold_vector(L, levels, per_level_thresh):
    """Per-coefficient soft thresholds: approx band -> 0 (passes through),
    detail band at level k -> per_level_thresh[k-1]."""
    t = np.zeros((L,), dtype=np.float64)
    start = L >> levels  # approx length, untouched
    for lev in range(levels, 0, -1):
        n = L >> lev
        t[start:start + n] = per_level_thresh[lev - 1]
        start += n
    return t


# ---------------------------------------------------------------------------
# Pallas kernel: forward DWT (MXU) -> soft threshold (VPU) -> inverse DWT (MXU)
# ---------------------------------------------------------------------------
def _haar_soft_kernel(x_ref, w_ref, wt_ref, t_ref, o_ref):
    # Cast the x tile IN-KERNEL so both dot operands share the matmul dtype
    # (bf16 by default) -> fast MXU path; accumulation stays f32.
    xa = x_ref[...].astype(w_ref.dtype)
    c = jnp.dot(xa, w_ref[...], preferred_element_type=jnp.float32)
    # Soft threshold (VPU, f32): sign(c)*max(|c|-t, 0) == c - clip(c, -t, +t).
    tb = t_ref[...]                                  # (2, L) f32: [-t ; +t]
    c_den = c - jnp.clip(c, tb[0:1, :], tb[1:2, :])
    # Inverse wavelet transform (MXU).
    o_ref[...] = jnp.dot(c_den.astype(wt_ref.dtype), wt_ref[...],
                         preferred_element_type=jnp.float32).astype(o_ref.dtype)


def _round_up(a, b):
    return ((a + b - 1) // b) * b


def _choose_row_tile(R, L, stream_itemsize, *, target_block_bytes=2 << 20,
                     min_rows=256, min_steps=8):
    """Row tile targeting ~target_block_bytes of streamed x per grid step
    (>= min_rows rows), but clamped so large problems keep >= min_steps grid
    steps (>= 4 per v7x TensorCore) for steady-state pipelining/megacore."""
    tr_big = _round_up(
        max(min_rows, target_block_bytes // max(1, L * stream_itemsize)), 8)
    tr_steps = _round_up(max(min_rows, -(-R // min_steps)), 8)
    tr = min(tr_big, tr_steps, _round_up(R, 8))
    return max(8, tr)


# ---------------------------------------------------------------------------
# One-time capability probe for single-buffered constant operands.
# ---------------------------------------------------------------------------
_SINGLE_BUFFER_OK = None


def _probe_kernel(c_ref, o_ref):
    o_ref[...] = c_ref[...] + 1.0


def _single_buffer_supported():
    """Feature-probe BlockSpec(pipeline_mode=pl.Buffered(1)) with a tiny,
    isolated compile.  The probe is independent of the real workload, so a
    broad catch here cannot mask real kernel failures (those always propagate
    from the main pallas_call)."""
    global _SINGLE_BUFFER_OK
    if _SINGLE_BUFFER_OK is not None:
        return _SINGLE_BUFFER_OK
    ok = hasattr(pl, "Buffered")
    if ok:
        try:
            spec = pl.BlockSpec((8, 128), lambda i: (0, 0),
                                pipeline_mode=pl.Buffered(1))
            out = pl.pallas_call(
                _probe_kernel,
                out_shape=jax.ShapeDtypeStruct((8, 128), jnp.float32),
                grid=(2,),
                in_specs=[spec],
                out_specs=pl.BlockSpec((8, 128), lambda i: (0, 0)),
            )(jnp.zeros((8, 128), jnp.float32))
            jax.block_until_ready(out)
        except Exception:  # probe only -- see docstring
            ok = False
    _SINGLE_BUFFER_OK = ok
    return ok


# ---------------------------------------------------------------------------
# Wrapper
# ---------------------------------------------------------------------------
def haar_soft_threshold_1d(x, W, Wt, t, *, matmul_dtype=jnp.bfloat16,
                           row_tile=None):
    """x: (B, C, L).  W = H.T / Wt = H: (L, L) Haar analysis / synthesis maps.
    t: (L,) per-coefficient soft thresholds (>= 0, 0 on the approx band).
    Returns (B, C, L) in x.dtype.  x/out stream in x.dtype (no wrapper-side
    pad/astype HBM passes); matmuls run in `matmul_dtype` with f32 accumulation."""
    B, C, L = x.shape
    R = B * C
    out_dtype = x.dtype

    x2d = x.reshape(R, L)                            # metadata-only reshape
    Wc = W.astype(matmul_dtype)                      # small (L,L) constants
    Wtc = Wt.astype(matmul_dtype)
    hi = jnp.maximum(t.astype(jnp.float32), 0.0).reshape(1, L)
    tb = jnp.concatenate([-hi, hi], axis=0)          # (2, L): [-t ; +t]

    x_item = jnp.dtype(x.dtype).itemsize
    o_item = jnp.dtype(out_dtype).itemsize
    w_item = jnp.dtype(matmul_dtype).itemsize

    if row_tile is None:
        TR = _choose_row_tile(R, L, x_item)
    else:
        TR = max(8, min(_round_up(int(row_tile), 8), _round_up(R, 8)))
    grid = (pl.cdiv(R, TR),)                         # ragged tail masked by Pallas

    single_buf = _single_buffer_supported()
    const_kw = dict(pipeline_mode=pl.Buffered(1)) if single_buf else {}

    in_specs = [
        pl.BlockSpec((TR, L), lambda i: (i, 0)),                  # x row tile
        pl.BlockSpec((L, L), lambda i: (0, 0), **const_kw),       # W  (resident)
        pl.BlockSpec((L, L), lambda i: (0, 0), **const_kw),       # Wt (resident)
        pl.BlockSpec((2, L), lambda i: (0, 0), **const_kw),       # [-t ; +t]
    ]
    out_specs = pl.BlockSpec((TR, L), lambda i: (i, 0))

    # Per-TensorCore VMEM budget (with headroom) + advisory cost estimate.
    w_bufs = 1 if single_buf else 2
    vmem_need = (2 * TR * L * (x_item + o_item)          # x/out double-buffered
                 + w_bufs * (2 * L * L * w_item + 2 * L * 4)
                 + 3 * TR * L * 4)                       # f32 intermediates
    try:
        phys_vmem = int(pltpu.get_tpu_info().vmem_capacity_bytes)
    except Exception:
        phys_vmem = 64 << 20
    vmem_limit = min(int(0.85 * phys_vmem), max(32 << 20, 2 * vmem_need))

    flops = 2 * 2 * R * L * L                            # two matmuls
    bytes_accessed = R * L * (x_item + o_item) + 2 * L * L * w_item + 2 * L * 4

    out2d = pl.pallas_call(
        _haar_soft_kernel,
        out_shape=jax.ShapeDtypeStruct((R, L), out_dtype),
        grid=grid,
        in_specs=in_specs,
        out_specs=out_specs,
        compiler_params=pltpu.CompilerParams(
            dimension_semantics=("parallel",),
            vmem_limit_bytes=int(vmem_limit)),
        cost_estimate=pl.CostEstimate(flops=flops, transcendentals=0,
                                      bytes_accessed=bytes_accessed),
    )(x2d, Wc, Wtc, tb)

    return out2d.reshape(B, C, L)


# ---------------------------------------------------------------------------
# Pure-JAX reference (explicit recursive Haar DWT) for correctness checking.
# ---------------------------------------------------------------------------
def _ref_forward(x2d, per_level_thresh, levels):
    s = SQRT2_INV
    a = x2d
    details = []
    for _ in range(levels):
        even, odd = a[:, 0::2], a[:, 1::2]
        details.append((even - odd) * s)
        a = (even + odd) * s
    den = []
    for lev, d in enumerate(details):
        th = per_level_thresh[lev]
        den.append(jnp.sign(d) * jnp.maximum(jnp.abs(d) - th, 0.0))
    rec = a
    for lev in range(levels - 1, -1, -1):
        d = den[lev]
        even = (rec + d) * s
        odd = (rec - d) * s
        out = jnp.zeros((rec.shape[0], rec.shape[1] * 2), rec.dtype)
        rec = out.at[:, 0::2].set(even).at[:, 1::2].set(odd)
    return rec


if __name__ == "__main__":
    # Small, module-consistent shapes (NCW layout): L divisible by 2**4 = 16;
    # L = 128 maps onto a single lane tile.
    B, C, L = 2, 4, 128

    key = jax.random.PRNGKey(0)
    x = jax.random.normal(key, (B, C, L), dtype=jnp.float32)

    # Deterministic "learned" soft-threshold parameters (one per level 1..4).
    per_level_thresh = [0.05, 0.10, 0.15, 0.20]

    H = build_haar_analysis_matrix(L, MAX_LEVEL)          # c_col = H @ x_col
    W = jnp.asarray(H.T, dtype=jnp.float32)               # row-vec: c = x @ W
    Wt = jnp.asarray(H, dtype=jnp.float32)                # inverse: x = c @ Wt
    t = jnp.asarray(build_threshold_vector(L, MAX_LEVEL, per_level_thresh),
                    dtype=jnp.float32)

    ref = _ref_forward(x.reshape(B * C, L), per_level_thresh,
                       MAX_LEVEL).reshape(B, C, L)
    ref = np.asarray(jax.block_until_ready(ref))

    # 1) f32 matmul path: bit-tight correctness check at the module shape.
    out_f32 = jax.block_until_ready(
        haar_soft_threshold_1d(x, W, Wt, t, matmul_dtype=jnp.float32))
    np.testing.assert_allclose(np.asarray(out_f32), ref, rtol=1e-5, atol=1e-5)

    # 2) default bf16 matmul operands + f32 MXU accumulation (the big dtype
    #    lever); bf16 weights -> ~1e-2 relative error, relaxed tolerance.
    out_bf16 = jax.block_until_ready(haar_soft_threshold_1d(x, W, Wt, t))
    np.testing.assert_allclose(np.asarray(out_bf16), ref, rtol=5e-2, atol=5e-2)

    # 3) multi-step grid with a ragged tail (R = 258 rows, row_tile = 64 ->
    #    5 grid steps, last block only partially valid -> exercises the
    #    masked-store path that replaced the wrapper-side jnp.pad).
    Bb, Cb = 6, 43
    xb = jax.random.normal(jax.random.PRNGKey(1), (Bb, Cb, L), dtype=jnp.float32)
    out_big = jax.block_until_ready(
        haar_soft_threshold_1d(xb, W, Wt, t, matmul_dtype=jnp.float32,
                               row_tile=64))
    ref_big = _ref_forward(xb.reshape(Bb * Cb, L), per_level_thresh,
                           MAX_LEVEL).reshape(Bb, Cb, L)
    np.testing.assert_allclose(np.asarray(out_big), np.asarray(ref_big),
                               rtol=1e-4, atol=1e-4)

    print("KERNEL_OK")
</pallas_src>

<mosaic_0001>
module attributes {stable_mosaic.version = 11 : i64} {
  func.func @_probe_kernel(%arg0: i32, %arg1: memref<8x128xf32, #tpu.memory_space<vmem>>, %arg2: memref<8x128xf32, #tpu.memory_space<vmem>>) attributes {dimension_semantics = [#tpu.dimension_semantics<arbitrary>], iteration_bounds = array<i64: 2>, scalar_prefetch = 0 : i64, scratch_operands = 0 : i64, tpu.core_type = #tpu.core_type<tc>, window_params = [{pipeline_mode = #tpu.pipeline_mode<synchronous>, transform_indices = @transform_0, window_bounds = array<i64: 8, 128>}, {pipeline_mode = #tpu.pipeline_mode<synchronous>, transform_indices = @transform_1, window_bounds = array<i64: 8, 128>}]} {
    %c0 = arith.constant 0 : index
    %c0_0 = arith.constant 0 : index
    %0 = vector.load %arg1[%c0, %c0_0] : memref<8x128xf32, #tpu.memory_space<vmem>>, vector<8x128xf32>
    %cst = arith.constant 1.000000e+00 : f32
    %1 = vector.broadcast %cst : f32 to vector<8x128xf32>
    %2 = arith.addf %0, %1 : vector<8x128xf32>
    %c0_1 = arith.constant 0 : index
    %c0_2 = arith.constant 0 : index
    %3 = vector.load %arg2[%c0_1, %c0_2] : memref<8x128xf32, #tpu.memory_space<vmem>>, vector<8x128xf32>
    tpu.vector_store %arg2[%c0_1, %c0_2], %2 {strides = array<i32>} : memref<8x128xf32, #tpu.memory_space<vmem>>, vector<8x128xf32>,
    return
  }
  func.func @transform_0(%arg0: i32) -> (i32, i32) {
    %c0_i32 = arith.constant 0 : i32
    %c0_i32_0 = arith.constant 0 : i32
    %c0_i32_1 = arith.constant 0 : i32
    return %c0_i32, %c0_i32_0 : i32, i32
  }
  func.func @transform_1(%arg0: i32) -> (i32, i32) {
    %c0_i32 = arith.constant 0 : i32
    %c0_i32_0 = arith.constant 0 : i32
    %c0_i32_1 = arith.constant 0 : i32
    return %c0_i32, %c0_i32_0 : i32, i32
  }
}

module attributes {stable_mosaic.version = 11 : i64} {
  func.func @_haar_soft_kernel(%arg0: i32, %arg1: memref<8x128xf32, #tpu.memory_space<vmem>>, %arg2: memref<128x128xf32, #tpu.memory_space<vmem>>, %arg3: memref<128x128xf32, #tpu.memory_space<vmem>>, %arg4: memref<2x128xf32, #tpu.memory_space<vmem>>, %arg5: memref<8x128xf32, #tpu.memory_space<vmem>>) attributes {dimension_semantics = [#tpu.dimension_semantics<parallel>], iteration_bounds = array<i64: 1>, scalar_prefetch = 0 : i64, scratch_operands = 0 : i64, tpu.core_type = #tpu.core_type<tc>, window_params = [{transform_indices = @transform_0, window_bounds = array<i64: 8, 128>}, {pipeline_mode = #tpu.pipeline_mode<synchronous>, transform_indices = @transform_1, window_bounds = array<i64: 128, 128>}, {pipeline_mode = #tpu.pipeline_mode<synchronous>, transform_indices = @transform_2, window_bounds = array<i64: 128, 128>}, {pipeline_mode = #tpu.pipeline_mode<synchronous>, transform_indices = @transform_3, window_bounds = array<i64: 2, 128>}, {transform_indices = @transform_4, window_bounds = array<i64: 8, 128>}]} {
    %c0 = arith.constant 0 : index
    %c0_0 = arith.constant 0 : index
    %0 = vector.load %arg1[%c0, %c0_0] : memref<8x128xf32, #tpu.memory_space<vmem>>, vector<8x128xf32>
    %c0_1 = arith.constant 0 : index
    %c0_2 = arith.constant 0 : index
    %1 = vector.load %arg2[%c0_1, %c0_2] : memref<128x128xf32, #tpu.memory_space<vmem>>, vector<128x128xf32>
    %cst = arith.constant dense<0.000000e+00> : vector<8x128xf32>
    %2 = tpu.matmul %0, %1, %cst {dimension_numbers = #tpu.dot_dimension_numbers<[1], [0], [0], [1], [0, 0, 1, 1], [], []>} : vector<8x128xf32>, vector<128x128xf32>, vector<8x128xf32> -> vector<8x128xf32>
    %c0_3 = arith.constant 0 : index
    %c0_4 = arith.constant 0 : index
    %3 = vector.load %arg4[%c0_3, %c0_4] : memref<2x128xf32, #tpu.memory_space<vmem>>, vector<2x128xf32>
    %4 = vector.extract_strided_slice %3 {offsets = [0, 0], sizes = [1, 128], strides = [1, 1]} : vector<2x128xf32> to vector<1x128xf32>
    %5 = vector.extract_strided_slice %3 {offsets = [1, 0], sizes = [1, 128], strides = [1, 1]} : vector<2x128xf32> to vector<1x128xf32>
    %6 = vector.broadcast %4 : vector<1x128xf32> to vector<8x128xf32>
    %7 = arith.maximumf %6, %2 : vector<8x128xf32>
    %8 = vector.broadcast %5 : vector<1x128xf32> to vector<8x128xf32>
    %9 = arith.minimumf %8, %7 : vector<8x128xf32>
    %10 = arith.subf %2, %9 : vector<8x128xf32>
    %c0_5 = arith.constant 0 : index
    %c0_6 = arith.constant 0 : index
    %11 = vector.load %arg3[%c0_5, %c0_6] : memref<128x128xf32, #tpu.memory_space<vmem>>, vector<128x128xf32>
    %cst_7 = arith.constant dense<0.000000e+00> : vector<8x128xf32>
    %12 = tpu.matmul %10, %11, %cst_7 {dimension_numbers = #tpu.dot_dimension_numbers<[1], [0], [0], [1], [0, 0, 1, 1], [], []>} : vector<8x128xf32>, vector<128x128xf32>, vector<8x128xf32> -> vector<8x128xf32>
    %c0_8 = arith.constant 0 : index
    %c0_9 = arith.constant 0 : index
    %13 = vector.load %arg5[%c0_8, %c0_9] : memref<8x128xf32, #tpu.memory_space<vmem>>, vector<8x128xf32>
    tpu.vector_store %arg5[%c0_8, %c0_9], %12 {strides = array<i32>} : memref<8x128xf32, #tpu.memory_space<vmem>>, vector<8x128xf32>,
    return
  }
  func.func @transform_0(%arg0: i32) -> (i32, i32) {
    %c0_i32 = arith.constant 0 : i32
    %c0_i32_0 = arith.constant 0 : i32
    return %arg0, %c0_i32 : i32, i32
  }
  func.func @transform_1(%arg0: i32) -> (i32, i32) {
    %c0_i32 = arith.constant 0 : i32
    %c0_i32_0 = arith.constant 0 : i32
    %c0_i32_1 = arith.constant 0 : i32
    return %c0_i32, %c0_i32_0 : i32, i32
  }
  func.func @transform_2(%arg0: i32) -> (i32, i32) {
    %c0_i32 = arith.constant 0 : i32
    %c0_i32_0 = arith.constant 0 : i32
    %c0_i32_1 = arith.constant 0 : i32
    return %c0_i32, %c0_i32_0 : i32, i32
  }
  func.func @transform_3(%arg0: i32) -> (i32, i32) {
    %c0_i32 = arith.constant 0 : i32
    %c0_i32_0 = arith.constant 0 : i32
    %c0_i32_1 = arith.constant 0 : i32
    return %c0_i32, %c0_i32_0 : i32, i32
  }
  func.func @transform_4(%arg0: i32) -> (i32, i32) {
    %c0_i32 = arith.constant 0 : i32
    %c0_i32_0 = arith.constant 0 : i32
    return %arg0, %c0_i32 : i32, i32
  }
}

</mosaic_0001>

<llo_original>
// kernel: tpu_custom_call.1
$region0: #{tpu_custom_call.1}
  #allocation0 [shape = 'u32[]', space=smem, size = 0x4, offset = 0x4, fixed_abs, tag = 'smem constant byte address 0x4 - core index']
  #allocation1 [shape = 'u32[144,128]{1,0:T(1,128)}', space=vmem, size = 0x12000, scoped, tag = 'internal scratch']
  %s0 = inlined_call_operand.hbm [shape: f32[8,128], index: 0, kind: input, shape index: {}]
  %s1 = inlined_call_operand.hbm [shape: f32[8,128], index: 1, kind: output, shape index: {}]
  %s2 = sld [smem:[#allocation0]]
  $region41: #{tpu_custom_call.1} parent=0
    _
  %s4 = ssub.s32 1, %s2
  %s5 = scalar_select 0, %s4, %s2
  $region1: #{tpu_custom_call.1} parent=0
    #allocation2 [shape = 'u8[4096]{0}', space=vmem, size = 0x1000, scoped, tag = 'input window, operand 0, single buffered']
    #allocation3 [shape = 's32[2]{0}', space=sflag, size = 0x8, scoped, tag = 'scoped memory for tpu_custom_call.1']
    #allocation4 [shape = 's32[2]{0}', space=sflag, size = 0x8, scoped, tag = 'scoped memory for tpu_custom_call.1']
    #allocation5 [shape = 'u8[4096]{0}', space=vmem, size = 0x1000, scoped, tag = 'output window, operand 0, single buffered']
    %6 = vsyncpa [#allocation3], 0
    %7 = vsyncpa [#allocation4], 0
    loop: start=0, step=1, limit=4
    $region2: #{tpu_custom_call.1} parent=1 // loop_pre_header
      _
    $region3: #{tpu_custom_call.1} parent=1 // loop_header
      %s9 = sphi 0, %s13
      %p10 = scmp.ge.s32.totalorder %s9, 4
      %s17 = sphi 0, %s17
      %s19 = sphi 0, %s17
      %s20 = sphi 0, %s19
      %s34 = sphi 0, %s20
      %s38 = sphi 0, %s38
      %s40 = sphi 0, %s38
      %s41 = sphi 0, %s40
      %s55 = sphi 0, %s41
    $region4: #{tpu_custom_call.1} parent=1 // loop_header_branch
      %12 = sbr.rel (%p10) target = $region8
    $region5: #{tpu_custom_call.1} parent=1 // loop_body
      %s14 = ssub.s32 %s9, 1
      %s15 = ssub.s32 %s9, 2
      %s16 = sadd.s32 %s9, 1
      %s18 = sadd.s32 %s17, 1
      %p21 = scmp.eq.s32.totalorder %s9, 1
      %p22 = scmp.ne.s32.totalorder %s17, %s19
      %p23 = scmp.eq.s32.totalorder %s9, 0
      %p24 = por %p22, %p23
      %p25 = scmp.ne.s32.totalorder %s17, %s19
      %p26 = scmp.eq.s32.totalorder %s14, 1
      %p27 = por %p25, %p26
      %p28 = scmp.ne.s32.totalorder %s19, %s20
      %p29 = scmp.eq.s32.totalorder %s14, 0
      %p30 = por %p28, %p29
      %p31 = scmp.ne.s32.totalorder %s19, %s20
      %p32 = scmp.eq.s32.totalorder %s15, 1
      %p33 = por %p31, %p32
      %p35 = scmp.ne.s32.totalorder %s20, %s34
      %p36 = scmp.eq.s32.totalorder %s15, 0
      %p37 = por %p35, %p36
      %s39 = sadd.s32 %s38, 1
      %p42 = scmp.eq.s32.totalorder %s9, 1
      %p43 = scmp.ne.s32.totalorder %s38, %s40
      %p44 = scmp.eq.s32.totalorder %s9, 0
      %p45 = por %p43, %p44
      %p46 = scmp.ne.s32.totalorder %s38, %s40
      %p47 = scmp.eq.s32.totalorder %s14, 1
      %p48 = por %p46, %p47
      %p49 = scmp.ne.s32.totalorder %s40, %s41
      %p50 = scmp.eq.s32.totalorder %s14, 0
      %p51 = por %p49, %p50
      %p52 = scmp.ne.s32.totalorder %s40, %s41
      %p53 = scmp.eq.s32.totalorder %s15, 1
      %p54 = por %p52, %p53
      %p56 = scmp.ne.s32.totalorder %s41, %s55
      %p57 = scmp.eq.s32.totalorder %s15, 0
      %p58 = por %p56, %p57
      %p59 = scmp.le.s32.totalorder 1, %s9
      %p60 = scmp.lt.s32.totalorder %s9, 3
      %p61 = pnand %p59, %p60
      %p62 = pneg %p61
      // Predicated region
      $region9: #{tpu_custom_call.1} parent=5 // pred_check
        _
      $region10: #{tpu_custom_call.1} parent=5 // pred_check_branch
        %64 = sbr.rel (%p61) target = $region12
      $region11: #{tpu_custom_call.1} parent=5 // pred_region
        %s65 = ssub.s32 %s9, 1
        // Predicated region
        $region13: #{tpu_custom_call.1} parent=11 // pred_check
          %p66 = pneg %p30
        $region14: #{tpu_custom_call.1} parent=11 // pred_check_branch
          %68 = sbr.rel (%p66) target = $region16
        $region15: #{tpu_custom_call.1} parent=11 // pred_region
          %s70 = ssub.s32 128, 128
          %71 = vsyncadd [#allocation3], %s70
          %s73 = sshll.u32 [#allocation2], 4
          %s74 = int_to_ptr.vmem [resolvable:$true] %s73
          %76 = dma.hbm_to_vmem [thread:$0]  %s0, 128, %s74, [#allocation3]
        $region16: #{tpu_custom_call.1} parent=11 // pred_fallthru
          _
      $region12: #{tpu_custom_call.1} parent=5 // pred_fallthru
        _
      %p77 = scmp.lt.s32.totalorder %s9, 2
      // Predicated region
      $region17: #{tpu_custom_call.1} parent=5 // pred_check
        %p78 = pneg %p77
      $region18: #{tpu_custom_call.1} parent=5 // pred_check_branch
        %80 = sbr.rel (%p78) target = $region20
      $region19: #{tpu_custom_call.1} parent=5 // pred_region
        _
      $region20: #{tpu_custom_call.1} parent=5 // pred_fallthru
        _
      %p81 = scmp.le.s32.totalorder 1, %s9
      %p82 = scmp.lt.s32.totalorder %s9, 3
      %p83 = pnand %p81, %p82
      %p84 = pneg %p83
      // Predicated region
      $region21: #{tpu_custom_call.1} parent=5 // pred_check
        _
      $region22: #{tpu_custom_call.1} parent=5 // pred_check_branch
        %86 = sbr.rel (%p83) target = $region24
      $region23: #{tpu_custom_call.1} parent=5 // pred_region
        %s87 = ssub.s32 %s9, 1
        // Predicated region
        $region25: #{tpu_custom_call.1} parent=23 // pred_check
          %p88 = pneg %p30
        $region26: #{tpu_custom_call.1} parent=23 // pred_check_branch
          %90 = sbr.rel (%p88) target = $region28
        $region27: #{tpu_custom_call.1} parent=23 // pred_region
          %91 = dma.done [#allocation3], 128
        $region28: #{tpu_custom_call.1} parent=23 // pred_fallthru
          _
        %p92 = pneg %p30
        %p93 = pneg %p27
        %p94 = pneg %p51
        %p95 = pneg %p48
        %v96 = vld [vmem:[#allocation2] sm:$0xff]
        %v97 = vadd.f32 %v96, 1.0
        %98 = vst [vmem:[#allocation5] sm:$0xff] %v97
        // Predicated region
        $region29: #{tpu_custom_call.1} parent=23 // pred_check
          %p99 = pneg %p48
        $region30: #{tpu_custom_call.1} parent=23 // pred_check_branch
          %101 = sbr.rel (%p99) target = $region32
        $region31: #{tpu_custom_call.1} parent=23 // pred_region
          %s103 = ssub.s32 128, 128
          %104 = vsyncadd [#allocation4], %s103
          %s106 = sshll.u32 [#allocation5], 4
          %s107 = int_to_ptr.vmem [resolvable:$true] %s106
          %109 = dma.vmem_to_hbm [thread:$0]  %s107, 128, %s1, [#allocation4]
        $region32: #{tpu_custom_call.1} parent=23 // pred_fallthru
          _
        // Predicated region
        $region33: #{tpu_custom_call.1} parent=23 // pred_check
          %p110 = pneg %p48
        $region34: #{tpu_custom_call.1} parent=23 // pred_check_branch
          %112 = sbr.rel (%p110) target = $region36
        $region35: #{tpu_custom_call.1} parent=23 // pred_region
          %113 = dma.done [#allocation4], 128
        $region36: #{tpu_custom_call.1} parent=23 // pred_fallthru
          _
      $region24: #{tpu_custom_call.1} parent=5 // pred_fallthru
        _
      %p114 = scmp.le.s32.totalorder 2, %s9
      // Predicated region
      $region37: #{tpu_custom_call.1} parent=5 // pred_check
        %p115 = pneg %p114
      $region38: #{tpu_custom_call.1} parent=5 // pred_check_branch
        %117 = sbr.rel (%p115) target = $region40
      $region39: #{tpu_custom_call.1} parent=5 // pred_region
        %s118 = ssub.s32 %s9, 2
      $region40: #{tpu_custom_call.1} parent=5 // pred_fallthru
        _
    $region6: #{tpu_custom_call.1} parent=1 // loop_footer
      %s13 = sadd.s32 1, %s9
    $region7: #{tpu_custom_call.1} parent=1 // loop_footer_branch
      %8 = sbr.rel target = $region3
    $region8: #{tpu_custom_call.1} parent=1 // loop_exit
      _
    %119 = vsyncpa [#allocation3], 1
    %s120 = scalar_lea.sflag [#allocation3], 1
    %121 = vsyncpa %s120, 1
    %122 = vsyncpa [#allocation4], 1
    %s123 = scalar_lea.sflag [#allocation4], 1
    %124 = vsyncpa %s123, 1

// kernel: tpu_custom_call.1
$region0: #{tpu_custom_call.1}
  #allocation0 [shape = 'u32[]', space=smem, size = 0x4, offset = 0x4, fixed_abs, tag = 'smem constant byte address 0x4 - core index']
  #allocation1 [shape = 'u32[144,128]{1,0:T(1,128)}', space=vmem, size = 0x12000, scoped, tag = 'internal scratch']
  %s0 = inlined_call_operand.hbm [shape: f32[8,128], index: 0, kind: input, shape index: {}]
  %s1 = inlined_call_operand.hbm [shape: f32[128,128], index: 1, kind: input, shape index: {}]
  %s2 = inlined_call_operand.hbm [shape: f32[128,128], index: 2, kind: input, shape index: {}]
  %s3 = inlined_call_operand.vmem [shape: f32[2,128], index: 3, kind: input, shape index: {}]
  %s4 = inlined_call_operand.hbm [shape: f32[8,128], index: 4, kind: output, shape index: {}]
  %s5 = sld [smem:[#allocation0]]
  $region38: #{tpu_custom_call.1} parent=0
    _
  %s7 = ssub.s32 1, %s5
  %s8 = scalar_select 0, %s7, %s5
  $region1: #{tpu_custom_call.1} parent=0
    #allocation2 [shape = 'u8[4096]{0}', space=vmem, size = 0x1000, scoped, tag = 'input window, operand 0, single buffered']
    #allocation3 [shape = 's32[1]{0}', space=sflag, size = 0x4, scoped, tag = 'scoped memory for tpu_custom_call.1']
    #allocation4 [shape = 's32[1]{0}', space=sflag, size = 0x4, scoped, tag = 'scoped memory for tpu_custom_call.1']
    #allocation5 [shape = 'u8[65536]{0}', space=vmem, size = 0x10000, scoped, tag = 'input window, operand 1, single buffered']
    #allocation6 [shape = 's32[1]{0}', space=sflag, size = 0x4, scoped, tag = 'scoped memory for tpu_custom_call.1']
    #allocation7 [shape = 'u8[65536]{0}', space=vmem, size = 0x10000, scoped, tag = 'input window, operand 2, single buffered']
    #allocation8 [shape = 'u8[4096]{0}', space=vmem, size = 0x1000, scoped, tag = 'output window, operand 0, single buffered']
    %9 = vsyncpa [#allocation3], 0
    %10 = vsyncpa [#allocation6], 0
    %11 = vsyncpa [#allocation4], 0
    // Predicated region
    $region2: #{tpu_custom_call.1} parent=1 // pred_check
      _
    $region3: #{tpu_custom_call.1} parent=1 // pred_check_branch
      %13 = sbr.rel (0) target = $region5
    $region4: #{tpu_custom_call.1} parent=1 // pred_region
      %s15 = ssub.s32 128, 128
      %16 = vsyncadd [#allocation3], %s15
      %s18 = sshll.u32 [#allocation2], 4
      %s19 = int_to_ptr.vmem [resolvable:$true] %s18
      %21 = dma.hbm_to_vmem [thread:$0]  %s0, 128, %s19, [#allocation3]
    $region5: #{tpu_custom_call.1} parent=1 // pred_fallthru
      _
    // Predicated region
    $region6: #{tpu_custom_call.1} parent=1 // pred_check
      _
    $region7: #{tpu_custom_call.1} parent=1 // pred_check_branch
      %23 = sbr.rel (0) target = $region9
    $region8: #{tpu_custom_call.1} parent=1 // pred_region
      %s25 = ssub.s32 2048, 2048
      %26 = vsyncadd [#allocation6], %s25
      %s27 = sshll.u32 [#allocation5], 4
      %s28 = int_to_ptr.vmem [resolvable:$true] %s27
      %33 = dma.hbm_to_vmem [thread:$0]  %s1, 2048, %s28, [#allocation6], 128, 128, 8
    $region9: #{tpu_custom_call.1} parent=1 // pred_fallthru
      _
    // Predicated region
    $region10: #{tpu_custom_call.1} parent=1 // pred_check
      _
    $region11: #{tpu_custom_call.1} parent=1 // pred_check_branch
      %35 = sbr.rel (0) target = $region13
    $region12: #{tpu_custom_call.1} parent=1 // pred_region
      %s37 = ssub.s32 2048, 2048
      %38 = vsyncadd [#allocation6], %s37
      %s39 = sshll.u32 [#allocation7], 4
      %s40 = int_to_ptr.vmem [resolvable:$true] %s39
      %45 = dma.hbm_to_vmem [thread:$0]  %s2, 2048, %s40, [#allocation6], 128, 128, 8
    $region13: #{tpu_custom_call.1} parent=1 // pred_fallthru
      _
    // Predicated region
    $region14: #{tpu_custom_call.1} parent=1 // pred_check
      _
    $region15: #{tpu_custom_call.1} parent=1 // pred_check_branch
      %47 = sbr.rel (0) target = $region17
    $region16: #{tpu_custom_call.1} parent=1 // pred_region
      _
    $region17: #{tpu_custom_call.1} parent=1 // pred_fallthru
      _
    // Predicated region
    $region18: #{tpu_custom_call.1} parent=1 // pred_check
      _
    $region19: #{tpu_custom_call.1} parent=1 // pred_check_branch
      %49 = sbr.rel (0) target = $region21
    $region20: #{tpu_custom_call.1} parent=1 // pred_region
      %50 = dma.done [#allocation3], 128
    $region21: #{tpu_custom_call.1} parent=1 // pred_fallthru
      _
    // Predicated region
    $region22: #{tpu_custom_call.1} parent=1 // pred_check
      _
    $region23: #{tpu_custom_call.1} parent=1 // pred_check_branch
      %52 = sbr.rel (0) target = $region25
    $region24: #{tpu_custom_call.1} parent=1 // pred_region
      %53 = dma.done [#allocation6], 2048
    $region25: #{tpu_custom_call.1} parent=1 // pred_fallthru
      _
    // Predicated region
    $region26: #{tpu_custom_call.1} parent=1 // pred_check
      _
    $region27: #{tpu_custom_call.1} parent=1 // pred_check_branch
      %55 = sbr.rel (0) target = $region29
    $region28: #{tpu_custom_call.1} parent=1 // pred_region
      %56 = dma.done [#allocation6], 2048
    $region29: #{tpu_custom_call.1} parent=1 // pred_fallthru
      _
    %v57 = vld [vmem:[#allocation2] sm:$0xff]
    %v58 = vld [vmem:[#allocation5] sm:$0xff]
    %v59 = vld [vmem:[#allocation5 + $0x8] sm:$0xff]
    %v60 = vld [vmem:[#allocation5 + $0x10] sm:$0xff]
    %v61 = vld [vmem:[#allocation5 + $0x18] sm:$0xff]
    %v62 = vld [vmem:[#allocation5 + $0x20] sm:$0xff]
    %v63 = vld [vmem:[#allocation5 + $0x28] sm:$0xff]
    %v64 = vld [vmem:[#allocation5 + $0x30] sm:$0xff]
    %v65 = vld [vmem:[#allocation5 + $0x38] sm:$0xff]
    %v66 = vld [vmem:[#allocation5 + $0x40] sm:$0xff]
    %v67 = vld [vmem:[#allocation5 + $0x48] sm:$0xff]
    %v68 = vld [vmem:[#allocation5 + $0x50] sm:$0xff]
    %v69 = vld [vmem:[#allocation5 + $0x58] sm:$0xff]
    %v70 = vld [vmem:[#allocation5 + $0x60] sm:$0xff]
    %v71 = vld [vmem:[#allocation5 + $0x68] sm:$0xff]
    %v72 = vld [vmem:[#allocation5 + $0x70] sm:$0xff]
    %v73 = vld [vmem:[#allocation5 + $0x78] sm:$0xff]
    %74 = vmatprep.subr.mxu0 0.0
    %75 = vmatpush1.msra.mxu0 %v73
    %76 = vmatprep.subr.mxu0 0.0
    %77 = vmatpush1.msra.mxu0 %v72
    %78 = vmatprep.subr.mxu0 0.0
    %79 = vmatpush1.msra.mxu0 %v71
    %80 = vmatprep.subr.mxu0 0.0
    %81 = vmatpush1.msra.mxu0 %v70
    %82 = vmatprep.subr.mxu0 0.0
    %83 = vmatpush1.msra.mxu0 %v69
    %84 = vmatprep.subr.mxu0 0.0
    %85 = vmatpush1.msra.mxu0 %v68
    %86 = vmatprep.subr.mxu0 0.0
    %87 = vmatpush1.msra.mxu0 %v67
    %88 = vmatprep.subr.mxu0 0.0
    %89 = vmatpush1.msra.mxu0 %v66
    %90 = vmatprep.subr.mxu0 0.0
    %91 = vmatpush1.msra.mxu0 %v65
    %92 = vmatprep.subr.mxu0 0.0
    %93 = vmatpush1.msra.mxu0 %v64
    %94 = vmatprep.subr.mxu0 0.0
    %95 = vmatpush1.msra.mxu0 %v63
    %96 = vmatprep.subr.mxu0 0.0
    %97 = vmatpush1.msra.mxu0 %v62
    %98 = vmatprep.subr.mxu0 0.0
    %99 = vmatpush1.msra.mxu0 %v61
    %100 = vmatprep.subr.mxu0 0.0
    %101 = vmatpush1.msra.mxu0 %v60
    %102 = vmatprep.subr.mxu0 0.0
    %103 = vmatpush1.msra.mxu0 %v59
    %104 = vmatprep.subr.mxu0 0.0
    %105 = vmatpush1.msra.mxu0 %v58
    %106 = vmatprep.subr.mxu0 0.0
    %107 = vmatpush2.msra.mxu0 0.0
    %108 = vmatprep.subr.mxu0 0.0
    %109 = vmatpush2.msra.mxu0 0.0
    %110 = vmatprep.subr.mxu0 0.0
    %111 = vmatpush2.msra.mxu0 0.0
    %112 = vmatprep.subr.mxu0 0.0
    %113 = vmatpush2.msra.mxu0 0.0
    %114 = vmatprep.subr.mxu0 0.0
    %115 = vmatpush2.msra.mxu0 0.0
    %116 = vmatprep.subr.mxu0 0.0
    %117 = vmatpush2.msra.mxu0 0.0
    %118 = vmatprep.subr.mxu0 0.0
    %119 = vmatpush2.msra.mxu0 0.0
    %120 = vmatprep.subr.mxu0 0.0
    %121 = vmatpush2.msra.mxu0 0.0
    %122 = vmatprep.subr.mxu0 0.0
    %123 = vmatpush2.msra.mxu0 0.0
    %124 = vmatprep.subr.mxu0 0.0
    %125 = vmatpush2.msra.mxu0 0.0
    %126 = vmatprep.subr.mxu0 0.0
    %127 = vmatpush2.msra.mxu0 0.0
    %128 = vmatprep.subr.mxu0 0.0
    %129 = vmatpush2.msra.mxu0 0.0
    %130 = vmatprep.subr.mxu0 0.0
    %131 = vmatpush2.msra.mxu0 0.0
    %132 = vmatprep.subr.mxu0 0.0
    %133 = vmatpush2.msra.mxu0 0.0
    %134 = vmatprep.subr.mxu0 0.0
    %135 = vmatpush2.msra.mxu0 0.0
    %136 = vmatprep.subr.mxu0 0.0
    %137 = vmatpush2.msra.mxu0 0.0
    %138 = vmatprep.mubr.f32.mxu0 0.0
    %139 = vmatmul.mubr.f32.gmra.mxu0 %v57
    %v140 = vpop.f32.mrf.mxu0
    %v141 = vadd.f32 0.0, %v140
    %v142 = vpop.f32.mrf.mxu0
    %143 = vdwg.mxu0
    %v144 = vld [vmem:[%s3] sm:$0x3]
    %v145 = vlaneseq
    %v146 = vshrl.u32 %v145, 7
    %v147 = vsub.s32 0, %v146
    %v148 = vrot.slane %v144, %v147
    %v149 = vmax.f32 %v148, %v141
    %v150 = vlaneseq
    %v151 = vshrl.u32 %v150, 7
    %v152 = vsub.s32 1, %v151
    %v153 = vrot.slane %v144, %v152
    %v154 = vmin.f32 %v153, %v149
    %v155 = vsub.f32 %v141, %v154
    %v156 = vld [vmem:[#allocation7] sm:$0xff]
    %v157 = vld [vmem:[#allocation7 + $0x8] sm:$0xff]
    %v158 = vld [vmem:[#allocation7 + $0x10] sm:$0xff]
    %v159 = vld [vmem:[#allocation7 + $0x18] sm:$0xff]
    %v160 = vld [vmem:[#allocation7 + $0x20] sm:$0xff]
    %v161 = vld [vmem:[#allocation7 + $0x28] sm:$0xff]
    %v162 = vld [vmem:[#allocation7 + $0x30] sm:$0xff]
    %v163 = vld [vmem:[#allocation7 + $0x38] sm:$0xff]
    %v164 = vld [vmem:[#allocation7 + $0x40] sm:$0xff]
    %v165 = vld [vmem:[#allocation7 + $0x48] sm:$0xff]
    %v166 = vld [vmem:[#allocation7 + $0x50] sm:$0xff]
    %v167 = vld [vmem:[#allocation7 + $0x58] sm:$0xff]
    %v168 = vld [vmem:[#allocation7 + $0x60] sm:$0xff]
    %v169 = vld [vmem:[#allocation7 + $0x68] sm:$0xff]
    %v170 = vld [vmem:[#allocation7 + $0x70] sm:$0xff]
    %v171 = vld [vmem:[#allocation7 + $0x78] sm:$0xff]
    %172 = vmatprep.subr.mxu0 0.0
    %173 = vmatpush1.msra.mxu0 %v171
    %174 = vmatprep.subr.mxu0 0.0
    %175 = vmatpush1.msra.mxu0 %v170
    %176 = vmatprep.subr.mxu0 0.0
    %177 = vmatpush1.msra.mxu0 %v169
    %178 = vmatprep.subr.mxu0 0.0
    %179 = vmatpush1.msra.mxu0 %v168
    %180 = vmatprep.subr.mxu0 0.0
    %181 = vmatpush1.msra.mxu0 %v167
    %182 = vmatprep.subr.mxu0 0.0
    %183 = vmatpush1.msra.mxu0 %v166
    %184 = vmatprep.subr.mxu0 0.0
    %185 = vmatpush1.msra.mxu0 %v165
    %186 = vmatprep.subr.mxu0 0.0
    %187 = vmatpush1.msra.mxu0 %v164
    %188 = vmatprep.subr.mxu0 0.0
    %189 = vmatpush1.msra.mxu0 %v163
    %190 = vmatprep.subr.mxu0 0.0
    %191 = vmatpush1.msra.mxu0 %v162
    %192 = vmatprep.subr.mxu0 0.0
    %193 = vmatpush1.msra.mxu0 %v161
    %194 = vmatprep.subr.mxu0 0.0
    %195 = vmatpush1.msra.mxu0 %v160
    %196 = vmatprep.subr.mxu0 0.0
    %197 = vmatpush1.msra.mxu0 %v159
    %198 = vmatprep.subr.mxu0 0.0
    %199 = vmatpush1.msra.mxu0 %v158
    %200 = vmatprep.subr.mxu0 0.0
    %201 = vmatpush1.msra.mxu0 %v157
    %202 = vmatprep.subr.mxu0 0.0
    %203 = vmatpush1.msra.mxu0 %v156
    %204 = vmatprep.subr.mxu0 0.0
    %205 = vmatpush2.msra.mxu0 0.0
    %206 = vmatprep.subr.mxu0 0.0
    %207 = vmatpush2.msra.mxu0 0.0
    %208 = vmatprep.subr.mxu0 0.0
    %209 = vmatpush2.msra.mxu0 0.0
    %210 = vmatprep.subr.mxu0 0.0
    %211 = vmatpush2.msra.mxu0 0.0
    %212 = vmatprep.subr.mxu0 0.0
    %213 = vmatpush2.msra.mxu0 0.0
    %214 = vmatprep.subr.mxu0 0.0
    %215 = vmatpush2.msra.mxu0 0.0
    %216 = vmatprep.subr.mxu0 0.0
    %217 = vmatpush2.msra.mxu0 0.0
    %218 = vmatprep.subr.mxu0 0.0
    %219 = vmatpush2.msra.mxu0 0.0
    %220 = vmatprep.subr.mxu0 0.0
    %221 = vmatpush2.msra.mxu0 0.0
    %222 = vmatprep.subr.mxu0 0.0
    %223 = vmatpush2.msra.mxu0 0.0
    %224 = vmatprep.subr.mxu0 0.0
    %225 = vmatpush2.msra.mxu0 0.0
    %226 = vmatprep.subr.mxu0 0.0
    %227 = vmatpush2.msra.mxu0 0.0
    %228 = vmatprep.subr.mxu0 0.0
    %229 = vmatpush2.msra.mxu0 0.0
    %230 = vmatprep.subr.mxu0 0.0
    %231 = vmatpush2.msra.mxu0 0.0
    %232 = vmatprep.subr.mxu0 0.0
    %233 = vmatpush2.msra.mxu0 0.0
    %234 = vmatprep.subr.mxu0 0.0
    %235 = vmatpush2.msra.mxu0 0.0
    %236 = vmatprep.mubr.f32.mxu0 0.0
    %237 = vmatmul.mubr.f32.gmra.mxu0 %v155
    %v238 = vpop.f32.mrf.mxu0
    %v239 = vadd.f32 0.0, %v238
    %v240 = vpop.f32.mrf.mxu0
    %241 = vdwg.mxu0
    %242 = vst [vmem:[#allocation8] sm:$0xff] %v239
    // Predicated region
    $region30: #{tpu_custom_call.1} parent=1 // pred_check
      _
    $region31: #{tpu_custom_call.1} parent=1 // pred_check_branch
      %244 = sbr.rel (0) target = $region33
    $region32: #{tpu_custom_call.1} parent=1 // pred_region
      %s246 = ssub.s32 128, 128
      %247 = vsyncadd [#allocation4], %s246
      %s249 = sshll.u32 [#allocation8], 4
      %s250 = int_to_ptr.vmem [resolvable:$true] %s249
      %252 = dma.vmem_to_hbm [thread:$0]  %s250, 128, %s4, [#allocation4]
    $region33: #{tpu_custom_call.1} parent=1 // pred_fallthru
      _
    // Predicated region
    $region34: #{tpu_custom_call.1} parent=1 // pred_check
      _
    $region35: #{tpu_custom_call.1} parent=1 // pred_check_branch
      %254 = sbr.rel (0) target = $region37
    $region36: #{tpu_custom_call.1} parent=1 // pred_region
      %255 = dma.done [#allocation4], 128
    $region37: #{tpu_custom_call.1} parent=1 // pred_fallthru
      _
    %256 = vsyncpa [#allocation3], 1
    %257 = vsyncpa [#allocation6], 1
    %258 = vsyncpa [#allocation4], 1

</llo_original>
